<compile_context>
chip_gen: v6e
topology: v6e:2x2x1
jax: 0.10.0
libtpu: 0.0.40
codegen_flags: <defaults>
</compile_context>

<pallas_src>
import functools

import jax
import jax.numpy as jnp
from jax import lax
from jax.experimental import pallas as pl
from jax.experimental.pallas import tpu as pltpu


# ----------------------------------------------------------------------------
# Kernels: each grid step writes one f32 partial sum for its batch tile.
# ----------------------------------------------------------------------------
def _bce_partial_kernel(x_ref, y_ref, o_ref, *, total_rows, tile_rows, ragged):
    # BCEWithLogitsLoss elementwise term (stable form):
    #   max(x,0) - x*y + log1p(exp(-|x|))
    x = x_ref[...].astype(jnp.float32)
    y = y_ref[...].astype(jnp.float32)
    loss = jnp.maximum(x, 0.0) - x * y + jnp.log1p(jnp.exp(-jnp.abs(x)))

    if not ragged:
        o_ref[0, 0] = jnp.sum(loss)
    else:
        i = pl.program_id(0)
        is_last = i == pl.num_programs(0) - 1

        @pl.when(jnp.logical_not(is_last))
        def _():
            o_ref[0, 0] = jnp.sum(loss)

        @pl.when(is_last)
        def _():
            # Only the ragged last tile pays for the iota + select; OOB block
            # rows are undefined, select discards them (no NaN propagation).
            row_ids = i * tile_rows + lax.broadcasted_iota(jnp.int32, loss.shape, 0)
            o_ref[0, 0] = jnp.sum(jnp.where(row_ids < total_rows, loss, 0.0))


def _kldiv_partial_kernel(x_ref, y_ref, o_ref, *, total_rows, tile_rows, ragged):
    # target_dist = y / (y.sum(-1, keepdim) + 1e-9)
    # pred_logprob = log_softmax(x, -1)
    # KLDivLoss(log_target=False): sum target_dist*(log(target_dist)-pred_logprob)
    # (xlogy semantics: terms with target_dist == 0 contribute exactly 0)
    x = x_ref[...].astype(jnp.float32)
    y = y_ref[...].astype(jnp.float32)

    tsum = jnp.sum(y, axis=-1, keepdims=True) + 1e-9
    inv_tsum = pl.reciprocal(tsum)          # per-row (TB,1); hoists the divide
    tdist = y * inv_tsum                    # per-element multiply instead of divide

    m = jnp.max(x, axis=-1, keepdims=True)
    lse = m + jnp.log(jnp.sum(jnp.exp(x - m), axis=-1, keepdims=True))
    logp = x - lse

    pos = tdist > 0.0
    safe_log_t = jnp.log(jnp.where(pos, tdist, 1.0))
    pointwise = jnp.where(pos, tdist * (safe_log_t - logp), 0.0)

    if not ragged:
        o_ref[0, 0] = jnp.sum(pointwise)
    else:
        i = pl.program_id(0)
        is_last = i == pl.num_programs(0) - 1

        @pl.when(jnp.logical_not(is_last))
        def _():
            o_ref[0, 0] = jnp.sum(pointwise)

        @pl.when(is_last)
        def _():
            row_ids = i * tile_rows + lax.broadcasted_iota(
                jnp.int32, pointwise.shape, 0)
            o_ref[0, 0] = jnp.sum(jnp.where(row_ids < total_rows, pointwise, 0.0))


# ----------------------------------------------------------------------------
# Tiling heuristics.
# ----------------------------------------------------------------------------
def _sublane_multiple(itemsize):
    # f32 -> 8, bf16 -> 16, int8/fp8 -> 32 (sub-32-bit dtypes pack along sublanes)
    return max(8, 8 * (4 // max(int(itemsize), 1)))


def _pick_tile_rows(R, C, itemsize):
    """Biggest tile whose per-buffer size sits around 2 MiB (review guidance:
    0.5-2 MiB buffers / >=1024 rows on the 33-wide layout), with a >=2-tile
    split when each half still moves >=512 KiB (v7x megacore + pipelining)."""
    c_pad = ((C + 127) // 128) * 128                 # lane padding in VMEM
    bytes_per_row = c_pad * max(int(itemsize), 1)    # one input, one buffer
    sub = _sublane_multiple(itemsize)

    target = 2 * 1024 * 1024                         # 2 MiB per input buffer
    tb = max(sub, target // bytes_per_row)
    tb -= tb % sub

    if tb < R:
        return int(tb)

    # Whole batch fits a single generous tile. Split in two only if each half
    # is still big enough that the extra ~0.35us grid step is not pure
    # overhead on v5e/v6e; on v7x this lets both TensorCores work.
    half = ((-(-R // 2) + sub - 1) // sub) * sub
    if half < R and half * bytes_per_row >= 512 * 1024:
        return int(half)
    return int(R)


def _bce_merge_factor(B, C, *, lane_target=1024, max_k=4096):
    """BCE is elementwise, so adjacent rows can be merged by a FREE contiguous
    reshape (B, C) -> (B/k, k*C). Pick the smallest divisor k of B such that
    the merged row is >= lane_target elements (>=~89% lane utilization) while
    keeping at least 8 rows (full sublane groups)."""
    if C >= lane_target or B < 16:
        return 1
    best = 1
    for k in range(2, min(B, max_k) + 1):
        if B % k or (B // k) < 8:
            continue
        best = k
        if k * C >= lane_target:
            break
    # TODO(synk): for prime-ish B no divisor exists and we fall back to the
    # skinny layout; a producer-side row-packed layout would fix that case.
    return best


# ----------------------------------------------------------------------------
# Wrapper
# ----------------------------------------------------------------------------
def combined_loss(pred_logits, target_smooth, main_loss_type="bce", *,
                  tile_rows=None, min_pallas_elems=0, bce_row_merge=None):
    """Pallas implementation of CombinedLoss.forward. Returns a scalar f32."""
    assert pred_logits.shape == target_smooth.shape
    assert pred_logits.ndim == 2
    B, C = pred_logits.shape

    if B * C < min_pallas_elems:
        if main_loss_type == "bce":
            return _ref_bce(pred_logits, target_smooth)
        if main_loss_type == "kldiv":
            return _ref_kldiv(pred_logits, target_smooth)
        raise ValueError(f"Unknown main_loss_type: {main_loss_type}")

    if main_loss_type == "bce":
        # Lane-dense layout for the elementwise loss: merge k adjacent rows
        # (free reshape of a contiguous row-major buffer, no extra HBM pass).
        k = _bce_merge_factor(B, C) if bce_row_merge is None else int(bce_row_merge)
        assert B % k == 0, (B, k)
        x = pred_logits.reshape(B // k, k * C)
        y = target_smooth.reshape(B // k, k * C)
        base_kernel = _bce_partial_kernel
        denom = jnp.float32(B * C)                   # reduction='mean'
    elif main_loss_type == "kldiv":
        x, y = pred_logits, target_smooth            # class axis must stay intact
        base_kernel = _kldiv_partial_kernel
        denom = jnp.float32(B)                       # reduction='batchmean'
    else:
        raise ValueError(f"Unknown main_loss_type: {main_loss_type}")

    R, C2 = x.shape
    itemsize = jnp.dtype(x.dtype).itemsize
    sub = _sublane_multiple(itemsize)

    if tile_rows is None:
        tile_rows = _pick_tile_rows(R, C2, itemsize)
    tile_rows = min(int(tile_rows), R)
    if tile_rows < R:
        # Block sublane dim must be a multiple of the packing-aware sublane
        # count unless it spans the full row dim.
        tile_rows = max(sub, tile_rows - tile_rows % sub)

    num_tiles = pl.cdiv(R, tile_rows)
    ragged = (R % tile_rows) != 0

    # VMEM limit derived from the real double-buffered footprint
    # (2 inputs x 2 buffers) + headroom, instead of a flat 32 MiB.
    c_pad = ((C2 + 127) // 128) * 128
    tile_bytes = tile_rows * c_pad * max(int(itemsize), 1)
    vmem_limit = int(min(64 * 1024 * 1024,
                         max(4 * 1024 * 1024, 6 * tile_bytes + 2 * 1024 * 1024)))

    kernel = functools.partial(base_kernel, total_rows=R, tile_rows=tile_rows,
                               ragged=ragged)

    partials = pl.pallas_call(
        kernel,
        out_shape=jax.ShapeDtypeStruct((num_tiles, 1), jnp.float32),
        grid=(num_tiles,),
        in_specs=[
            pl.BlockSpec((tile_rows, C2), lambda i: (i, 0)),
            pl.BlockSpec((tile_rows, C2), lambda i: (i, 0)),
        ],
        # One scalar partial sum per tile, written through SMEM (no masked
        # partial vst into a padded VMEM tile).
        out_specs=pl.BlockSpec((1, 1), lambda i: (i, 0),
                               memory_space=pltpu.MemorySpace.SMEM),
        compiler_params=pltpu.CompilerParams(
            # Tiles are independent -> parallel (v7x can split across its 2 TCs).
            dimension_semantics=("parallel",),
            vmem_limit_bytes=vmem_limit,
        ),
    )(x, y)

    return jnp.sum(partials) / denom


# ----------------------------------------------------------------------------
# Pure-JAX references (also used as the tiny-input fallback path).
# ----------------------------------------------------------------------------
def _ref_bce(x, y):
    x = x.astype(jnp.float32)
    y = y.astype(jnp.float32)
    loss = jnp.maximum(x, 0.0) - x * y + jnp.log1p(jnp.exp(-jnp.abs(x)))
    return jnp.mean(loss)


def _ref_kldiv(x, y):
    x = x.astype(jnp.float32)
    y = y.astype(jnp.float32)
    tdist = y / (jnp.sum(y, axis=-1, keepdims=True) + 1e-9)
    logp = jax.nn.log_softmax(x, axis=-1)
    pw = jnp.where(tdist > 0.0,
                   tdist * (jnp.log(jnp.where(tdist > 0.0, tdist, 1.0)) - logp),
                   0.0)
    return jnp.sum(pw) / x.shape[0]


if __name__ == "__main__":
    key = jax.random.PRNGKey(0)
    k1, k2, k3, k4 = jax.random.split(key, 4)

    # CombinedLoss has no learnable parameters; inputs are (B, M+1).
    B, M = 8, 32
    pred_small = jax.random.normal(k1, (B, M + 1), dtype=jnp.float32)
    targ_small = jax.random.uniform(k2, (B, M + 1), dtype=jnp.float32)  # 0-1 probs

    bce = jax.block_until_ready(combined_loss(pred_small, targ_small, "bce"))
    kld = jax.block_until_ready(combined_loss(pred_small, targ_small, "kldiv"))
    assert jnp.allclose(bce, _ref_bce(pred_small, targ_small), rtol=1e-5, atol=1e-5), \
        (bce, _ref_bce(pred_small, targ_small))
    assert jnp.allclose(kld, _ref_kldiv(pred_small, targ_small), rtol=1e-5, atol=1e-5), \
        (kld, _ref_kldiv(pred_small, targ_small))

    # Larger, non-tile-aligned batch.
    B2 = 1000
    pred_big = jax.random.normal(k3, (B2, M + 1), dtype=jnp.float32)
    targ_big = jax.random.uniform(k4, (B2, M + 1), dtype=jnp.float32)
    ref_b = _ref_bce(pred_big, targ_big)
    ref_k = _ref_kldiv(pred_big, targ_big)

    # Auto-tiled paths (row-merged lane-dense BCE + heuristic tile sizing).
    bce2 = jax.block_until_ready(combined_loss(pred_big, targ_big, "bce"))
    kld2 = jax.block_until_ready(combined_loss(pred_big, targ_big, "kldiv"))
    # Forced multi-tile paths: exercise the parallel grid, BlockSpec
    # double-buffering, and the pl.when-gated ragged-last-tile mask.
    bce3 = jax.block_until_ready(combined_loss(pred_big, targ_big, "bce", tile_rows=8))
    kld3 = jax.block_until_ready(combined_loss(pred_big, targ_big, "kldiv", tile_rows=128))

    assert jnp.allclose(bce2, ref_b, rtol=1e-4, atol=1e-5), (bce2, ref_b)
    assert jnp.allclose(kld2, ref_k, rtol=1e-4, atol=1e-5), (kld2, ref_k)
    assert jnp.allclose(bce3, ref_b, rtol=1e-4, atol=1e-5), (bce3, ref_b)
    assert jnp.allclose(kld3, ref_k, rtol=1e-4, atol=1e-5), (kld3, ref_k)

    print("KERNEL_OK")
</pallas_src>

<mosaic_0001>
module attributes {stable_mosaic.version = 11 : i64} {
  func.func @_bce_partial_kernel(%arg0: i32, %arg1: memref<8x33xf32, #tpu.memory_space<vmem>>, %arg2: memref<8x33xf32, #tpu.memory_space<vmem>>, %arg3: memref<1x1xf32, #tpu.memory_space<smem>>) attributes {dimension_semantics = [#tpu.dimension_semantics<parallel>], iteration_bounds = array<i64: 1>, scalar_prefetch = 0 : i64, scratch_operands = 0 : i64, tpu.core_type = #tpu.core_type<tc>, window_params = [{transform_indices = @transform_0, window_bounds = array<i64: 8, 33>}, {transform_indices = @transform_1, window_bounds = array<i64: 8, 33>}, {transform_indices = @transform_2, window_bounds = array<i64: 1, 1>}]} {
    %c0 = arith.constant 0 : index
    %c0_0 = arith.constant 0 : index
    %0 = vector.load %arg1[%c0, %c0_0] : memref<8x33xf32, #tpu.memory_space<vmem>>, vector<8x33xf32>
    %c0_1 = arith.constant 0 : index
    %c0_2 = arith.constant 0 : index
    %1 = vector.load %arg2[%c0_1, %c0_2] : memref<8x33xf32, #tpu.memory_space<vmem>>, vector<8x33xf32>
    %cst = arith.constant 0.000000e+00 : f32
    %2 = vector.broadcast %cst : f32 to vector<8x33xf32>
    %3 = arith.maximumf %0, %2 : vector<8x33xf32>
    %4 = arith.mulf %0, %1 : vector<8x33xf32>
    %5 = arith.subf %3, %4 : vector<8x33xf32>
    %6 = math.absf %0 : vector<8x33xf32>
    %cst_3 = arith.constant 0.000000e+00 : f32
    %7 = vector.broadcast %cst_3 : f32 to vector<8x33xf32>
    %8 = arith.subf %7, %6 : vector<8x33xf32>
    %9 = math.exp %8 : vector<8x33xf32>
    %10 = math.log1p %9 : vector<8x33xf32>
    %11 = arith.addf %5, %10 : vector<8x33xf32>
    %12 = vector.shape_cast %11 : vector<8x33xf32> to vector<1x8x33xf32>
    %cst_4 = arith.constant dense<0.000000e+00> : vector<1xf32>
    %13 = vector.multi_reduction <add>, %12, %cst_4 [1, 2] : vector<1x8x33xf32> to vector<1xf32>
    %14 = vector.shape_cast %13 : vector<1xf32> to vector<1x1x1xf32>
    %15 = vector.extract %14[0, 0, 0] : f32 from vector<1x1x1xf32>
    %c0_5 = arith.constant 0 : index
    %c0_6 = arith.constant 0 : index
    %16 = memref.load %arg3[%c0_5, %c0_6] : memref<1x1xf32, #tpu.memory_space<smem>>
    memref.store %15, %arg3[%c0_5, %c0_6] : memref<1x1xf32, #tpu.memory_space<smem>>
    return
  }
  func.func @transform_0(%arg0: i32) -> (i32, i32) {
    %c0_i32 = arith.constant 0 : i32
    %c0_i32_0 = arith.constant 0 : i32
    return %arg0, %c0_i32 : i32, i32
  }
  func.func @transform_1(%arg0: i32) -> (i32, i32) {
    %c0_i32 = arith.constant 0 : i32
    %c0_i32_0 = arith.constant 0 : i32
    return %arg0, %c0_i32 : i32, i32
  }
  func.func @transform_2(%arg0: i32) -> (i32, i32) {
    %c0_i32 = arith.constant 0 : i32
    %c0_i32_0 = arith.constant 0 : i32
    return %arg0, %c0_i32 : i32, i32
  }
}

</mosaic_0001>

<llo_original>
// kernel: tpu_custom_call.1
$region0: #{tpu_custom_call.1}
  #allocation0 [shape = 'u32[]', space=smem, size = 0x4, offset = 0x4, fixed_abs, tag = 'smem constant byte address 0x4 - core index']
  #allocation1 [shape = 'u32[144,128]{1,0:T(1,128)}', space=vmem, size = 0x12000, scoped, tag = 'internal scratch']
  %s0 = inlined_call_operand.hbm [shape: f32[8,33], index: 0, kind: input, shape index: {}]
  %s1 = inlined_call_operand.hbm [shape: f32[8,33], index: 1, kind: input, shape index: {}]
  %s2 = inlined_call_operand.hbm [shape: f32[1,1], index: 2, kind: output, shape index: {}]
  %s3 = sld [smem:[#allocation0]]
  $region26: #{tpu_custom_call.1} parent=0
    _
  %s5 = ssub.s32 1, %s3
  %s6 = scalar_select 0, %s5, %s3
  $region1: #{tpu_custom_call.1} parent=0
    #allocation2 [shape = 'u8[4096]{0}', space=vmem, size = 0x1000, scoped, tag = 'input window, operand 0, single buffered']
    #allocation3 [shape = 's32[1]{0}', space=sflag, size = 0x4, scoped, tag = 'scoped memory for tpu_custom_call.1']
    #allocation4 [shape = 's32[1]{0}', space=sflag, size = 0x4, scoped, tag = 'scoped memory for tpu_custom_call.1']
    #allocation5 [shape = 'u8[4096]{0}', space=vmem, size = 0x1000, scoped, tag = 'input window, operand 1, single buffered']
    #allocation6 [shape = 's32[1]{0}', space=sflag, size = 0x4, scoped, tag = 'scoped memory for tpu_custom_call.1']
    #allocation7 [shape = 'u8[512]{0}', space=smem, size = 0x200, scoped, tag = 'output window, operand 0, single buffered']
    %7 = vsyncpa [#allocation3], 0
    %8 = vsyncpa [#allocation6], 0
    %9 = vsyncpa [#allocation4], 0
    // Predicated region
    $region2: #{tpu_custom_call.1} parent=1 // pred_check
      _
    $region3: #{tpu_custom_call.1} parent=1 // pred_check_branch
      %11 = sbr.rel (0) target = $region5
    $region4: #{tpu_custom_call.1} parent=1 // pred_region
      %s13 = ssub.s32 128, 128
      %14 = vsyncadd [#allocation3], %s13
      %s16 = sshll.u32 [#allocation2], 4
      %s17 = int_to_ptr.vmem [resolvable:$true] %s16
      %19 = dma.hbm_to_vmem [thread:$0]  %s0, 128, %s17, [#allocation3]
    $region5: #{tpu_custom_call.1} parent=1 // pred_fallthru
      _
    // Predicated region
    $region6: #{tpu_custom_call.1} parent=1 // pred_check
      _
    $region7: #{tpu_custom_call.1} parent=1 // pred_check_branch
      %21 = sbr.rel (0) target = $region9
    $region8: #{tpu_custom_call.1} parent=1 // pred_region
      %s23 = ssub.s32 128, 128
      %24 = vsyncadd [#allocation6], %s23
      %s26 = sshll.u32 [#allocation5], 4
      %s27 = int_to_ptr.vmem [resolvable:$true] %s26
      %29 = dma.hbm_to_vmem [thread:$0]  %s1, 128, %s27, [#allocation6]
    $region9: #{tpu_custom_call.1} parent=1 // pred_fallthru
      _
    // Predicated region
    $region10: #{tpu_custom_call.1} parent=1 // pred_check
      _
    $region11: #{tpu_custom_call.1} parent=1 // pred_check_branch
      %31 = sbr.rel (0) target = $region13
    $region12: #{tpu_custom_call.1} parent=1 // pred_region
      %32 = dma.done [#allocation3], 128
    $region13: #{tpu_custom_call.1} parent=1 // pred_fallthru
      _
    // Predicated region
    $region14: #{tpu_custom_call.1} parent=1 // pred_check
      _
    $region15: #{tpu_custom_call.1} parent=1 // pred_check_branch
      %34 = sbr.rel (0) target = $region17
    $region16: #{tpu_custom_call.1} parent=1 // pred_region
      %35 = dma.done [#allocation6], 128
    $region17: #{tpu_custom_call.1} parent=1 // pred_fallthru
      _
    %v36 = vld [vmem:[#allocation2] sm:$0xff]
    %v37 = vld [vmem:[#allocation5] sm:$0xff]
    %v38 = vmax.f32 %v36, 0.0
    %v39 = vmul.f32 %v36, %v37
    %v40 = vsub.f32 %v38, %v39
    %v41 = vand.u32 2147483647, %v36
    %v42 = vsub.f32 0.0, %v41
    %v43 = vmul.f32 %v42, 1.442695
    %v44 = vpow.pop %v43
    %v45 = vadd.f32 %v44, 1.0
    %v46 = vlog2.pop %v45
    %v47 = vmul.f32 %v46, 0.6931472
    %v48 = vmul.f32 -0.5, %v44
    %v49 = vadd.f32 %v48, 1.0
    %v50 = vmul.f32 %v49, %v44
    %v51 = vand.u32 2147483647, %v44
    %vm52 = vcmp.lt.f32.partialorder %v51, 0.0004427343
    %v53 = vsel %vm52, %v50, %v47
    %v54 = vadd.f32 %v40, %v53
    %vm55 = vcmask 269312
    %v56 = vsel %vm55, %v54, 0.0
    %57 = vadd.xlane.f32.xlu0 %v56
    %v58 = vpop.xlane.xlu0 %57
    %v59 = vrot.slane %v58, 4
    %v60 = vadd.f32 %v58, %v59
    %v61 = vrot.slane %v60, 2
    %v62 = vadd.f32 %v60, %v61
    %v63 = vrot.slane %v62, 1
    %v64 = vadd.f32 %v62, %v63
    %s65 = vtos %v64
    %s66 = scalar_lea.smem [#allocation7], 0
    %67 = sst [smem:[%s66]] %s65
    // Predicated region
    $region18: #{tpu_custom_call.1} parent=1 // pred_check
      _
    $region19: #{tpu_custom_call.1} parent=1 // pred_check_branch
      %69 = sbr.rel (0) target = $region21
    $region20: #{tpu_custom_call.1} parent=1 // pred_region
      %s71 = ssub.s32 16, 16
      %72 = vsyncadd [#allocation4], %s71
      %75 = dma.smem_to_hbm [#allocation7], 16, %s2, [#allocation4]
    $region21: #{tpu_custom_call.1} parent=1 // pred_fallthru
      _
    // Predicated region
    $region22: #{tpu_custom_call.1} parent=1 // pred_check
      _
    $region23: #{tpu_custom_call.1} parent=1 // pred_check_branch
      %77 = sbr.rel (0) target = $region25
    $region24: #{tpu_custom_call.1} parent=1 // pred_region
      %78 = dma.done [#allocation4], 16
    $region25: #{tpu_custom_call.1} parent=1 // pred_fallthru
      _
    %79 = sfence
    %80 = vsyncpa [#allocation3], 1
    %81 = vsyncpa [#allocation6], 1
    %82 = vsyncpa [#allocation4], 1

</llo_original>
